<compile_context>
chip_gen: v5e
topology: v5e:2x2
jax: 0.10.0
libtpu: 0.0.40
codegen_flags: <defaults>
</compile_context>

<pallas_src>
import math

import jax
import jax.numpy as jnp
from jax import lax
from jax.experimental import pallas as pl
from jax.experimental.pallas import tpu as pltpu


# ----------------------------------------------------------------------------
# Parameter initialization (plain JAX glue; mirrors fourier_features_ + rescale)
# ----------------------------------------------------------------------------
def create_grid(dims, dtype=jnp.float32, normalize=True):
    if normalize:
        lens = [jnp.linspace(-1.0, 1.0, d, dtype=dtype) for d in dims]
    else:
        lens = [jnp.arange(d, dtype=dtype) for d in dims]
    grid = jnp.stack(jnp.meshgrid(*lens, indexing="ij"), axis=-1)
    return grid.reshape(1, -1, len(dims))


def init_positions(key, spatial_size, hidden_size, std=1.0):
    assert hidden_size % 2 == 0, "Hidden size must be even"
    ndim = len(spatial_size)
    w = std * jax.random.normal(key, (ndim, hidden_size // 2), dtype=jnp.float32)
    grid = create_grid(spatial_size)[0]                       # (L, ndim)
    feats = grid @ w                                          # (L, hidden//2)
    feats = jnp.concatenate([jnp.sin(feats), jnp.cos(feats)], axis=-1)
    feats = feats / math.sqrt(hidden_size)                    # (L, hidden)
    shift = feats.mean()
    scale = 0.02 / feats.std(ddof=1)                          # torch std is unbiased
    return (feats - shift) * scale


# ----------------------------------------------------------------------------
# Bicubic 1-D interpolation matrix (PyTorch semantics: a=-0.75,
# align_corners=False, antialias=False, border-clamped taps).
# ----------------------------------------------------------------------------
def bicubic_matrix(in_size, out_size, a=-0.75):
    if in_size == out_size:
        return jnp.eye(out_size, dtype=jnp.float32)
    scale = in_size / out_size
    i = jnp.arange(out_size, dtype=jnp.float32)
    x = (i + 0.5) * scale - 0.5
    x0 = jnp.floor(x)
    t = x - x0

    def cubic1(s):  # |s| <= 1
        return ((a + 2.0) * s - (a + 3.0)) * s * s + 1.0

    def cubic2(s):  # 1 < |s| < 2
        return ((a * s - 5.0 * a) * s + 8.0 * a) * s - 4.0 * a

    w = jnp.stack(
        [cubic2(t + 1.0), cubic1(t), cubic1(1.0 - t), cubic2(2.0 - t)], axis=1
    )  # (out, 4)
    idx = x0.astype(jnp.int32)[:, None] + jnp.arange(-1, 3, dtype=jnp.int32)[None, :]
    idx = jnp.clip(idx, 0, in_size - 1)                       # border replicate
    rows = jnp.broadcast_to(jnp.arange(out_size, dtype=jnp.int32)[:, None], idx.shape)
    W = jnp.zeros((out_size, in_size), dtype=jnp.float32)
    return W.at[rows, idx].add(w)


# ----------------------------------------------------------------------------
# Fused separable-bicubic-resize Pallas kernel (one C block per grid step)
# ----------------------------------------------------------------------------
def _fused_bicubic_kernel(a_h_ref, a_w_ref, x_ref, o_ref, t_ref):
    """a_h:(H_out,H_in) f32, a_w:(W_out,W_in) f32, x:(H_in,W_in,tc),
    o:(H_out,W_out,tc), t (VMEM scratch, f32):(H_out,W_in,tc)."""
    h_in, w_in, tc = x_ref.shape
    h_out = a_h_ref.shape[0]
    w_out = a_w_ref.shape[0]

    # Pass 1 -- resize the H axis: one lane-dense 2-D MXU dot per input column.
    # The intermediate is written straight into VMEM scratch (never hits HBM).
    a_h = a_h_ref[...].astype(x_ref.dtype)
    for wi in range(w_in):                                    # static, small
        t_ref[:, wi, :] = jnp.dot(
            a_h, x_ref[:, wi, :], preferred_element_type=jnp.float32
        )

    # Pass 2 -- resize the W axis as a leading-batch matmul over H_out
    # ('bqk,bkd->bqd'): the result lands directly in (H_out, W_out, tc)
    # layout, so no in-kernel transpose/reshape and the store is lane-dense.
    a_w_b = jnp.broadcast_to(a_w_ref[...][None], (h_out, w_out, w_in))
    out = lax.dot_general(
        a_w_b, t_ref[...],
        dimension_numbers=(((2,), (1,)), ((0,), (0,))),
        preferred_element_type=jnp.float32,
    )
    o_ref[...] = out.astype(o_ref.dtype)


def _v7x_like():
    try:
        return "v7" in jax.devices()[0].device_kind.lower()
    except Exception:
        return False


def _pick_lane_block(h_in, w_in, h_out, w_out, c, x_itemsize, out_itemsize,
                     vmem_budget_bytes, lane_blocks):
    """C-block width tc: a 128-multiple divisor of C (or C itself).

    Single block whenever it fits the VMEM budget (the op is launch/step
    overhead bound, not compute bound); split only for very large grids (keeps
    v7x's smaller VMEM safe) or to place >=2 blocks on v7x's two TensorCores.
    """
    def fits(tc):
        ws = 2 * h_in * w_in * tc * x_itemsize        # x block, double-buffered
        ws += 2 * h_out * w_out * tc * out_itemsize   # out block, double-buffered
        ws += h_out * w_in * tc * 4                   # f32 scratch intermediate
        return ws <= vmem_budget_bytes

    if c % 128 != 0:
        return c                                      # tiny/irregular hidden: 1 block
    divisors = [d for d in range(128, c + 1, 128) if c % d == 0]
    fitting = [d for d in divisors if fits(d)]
    tc = max(fitting) if fitting else 128
    if lane_blocks > 1:
        multi = [d for d in fitting if c // d >= lane_blocks]
        if multi:
            tc = max(multi)
    return tc


# ----------------------------------------------------------------------------
# Forward pass: LearnablePosition.forward(dims) in eval mode
# ----------------------------------------------------------------------------
def learnable_position_forward(positions, spatial_size, dims=None, *,
                               compute_dtype=None,
                               vmem_budget_bytes=12 * 1024 * 1024,
                               lane_blocks=None):
    """LearnablePosition.forward(dims), eval mode (dropout p=0 -> identity).

    Perf note: for a fixed (spatial_size, dims) pair the result is independent
    of the forward activations -- compute once and cache at the call site.
    """
    spatial_size = tuple(int(s) for s in spatial_size)
    dims = tuple(int(d) for d in dims) if dims is not None else spatial_size
    c = positions.shape[-1]
    l_out = math.prod(dims)

    if dims == spatial_size:
        # Identity path: torch does positions.view(1, L, C) + no-op dropout.
        return positions.reshape(1, l_out, c)

    assert len(spatial_size) == 2 and len(dims) == 2, "bicubic path is 2-D"
    h_in, w_in = spatial_size
    h_out, w_out = dims

    if compute_dtype is None:
        compute_dtype = (jnp.bfloat16 if positions.dtype == jnp.bfloat16
                         else jnp.float32)
    if lane_blocks is None:
        lane_blocks = 2 if _v7x_like() else 1         # v7x: 2 TensorCores/chip

    a_h = bicubic_matrix(h_in, h_out)                 # (H_out, H_in) f32, tiny
    a_w = bicubic_matrix(w_in, w_out)                 # (W_out, W_in) f32, tiny
    x3 = positions.reshape(h_in, w_in, c).astype(compute_dtype)

    tc = _pick_lane_block(h_in, w_in, h_out, w_out, c,
                          jnp.dtype(compute_dtype).itemsize,
                          jnp.dtype(positions.dtype).itemsize,
                          vmem_budget_bytes, lane_blocks)
    num_blocks = c // tc

    cost = pl.CostEstimate(
        flops=2 * c * w_in * (h_out * h_in + h_out * w_out),
        transcendentals=0,
        bytes_accessed=(h_in * w_in * c * jnp.dtype(compute_dtype).itemsize
                        + l_out * c * jnp.dtype(positions.dtype).itemsize
                        + 4 * (a_h.size + a_w.size)),
    )

    out3 = pl.pallas_call(
        _fused_bicubic_kernel,
        out_shape=jax.ShapeDtypeStruct((h_out, w_out, c), positions.dtype),
        grid=(num_blocks,),
        in_specs=[
            pl.BlockSpec((h_out, h_in), lambda j: (0, 0)),     # tiny, resident
            pl.BlockSpec((w_out, w_in), lambda j: (0, 0)),     # tiny, resident
            pl.BlockSpec((h_in, w_in, tc), lambda j: (0, 0, j)),
        ],
        out_specs=pl.BlockSpec((h_out, w_out, tc), lambda j: (0, 0, j)),
        scratch_shapes=[pltpu.VMEM((h_out, w_in, tc), jnp.float32)],
        compiler_params=pltpu.CompilerParams(dimension_semantics=("parallel",)),
        cost_estimate=cost,
    )(a_h, a_w, x3)

    # TODO(synk): training-mode dropout (p > 0) would need pltpu.prng_seed +
    # pltpu.prng_random_bits inside the kernel; eval / p=0.0 is the identity.
    return out3.reshape(1, l_out, c)


if __name__ == "__main__":
    hidden_size = 128          # multiple of 128 -> fully lane-dense kernel I/O
    key = jax.random.PRNGKey(0)
    k1, k2, k3 = jax.random.split(key, 3)

    # --- Case 1: dims == spatial_size -> identity (no kernel, pure reshape) ---
    spatial = (4, 4)
    pos = init_positions(k1, spatial, hidden_size)                  # (16, 128)
    out_same = jax.block_until_ready(learnable_position_forward(pos, spatial, None))
    assert out_same.shape == (1, 16, hidden_size)
    assert jnp.array_equal(out_same, pos.reshape(1, 16, hidden_size))

    # --- Case 2: square bicubic upsample (4, 4) -> (8, 8) ---
    dims = (8, 8)
    out_up = jax.block_until_ready(learnable_position_forward(pos, spatial, dims))
    assert out_up.shape == (1, 64, hidden_size)
    # Reference: exact dense operator for separable bicubic = kron(A_h, A_w)
    # applied to the H-major flattened grid (mirrors F.interpolate's math).
    w_ref = jnp.kron(bicubic_matrix(4, 8), bicubic_matrix(4, 8))
    ref_up = (w_ref @ pos).reshape(1, 64, hidden_size)
    assert jnp.allclose(out_up, ref_up, atol=1e-4, rtol=1e-4)

    # --- Case 3: non-square resize (4, 6) -> (8, 3)  (guards H/W ordering) ---
    spatial2, dims2 = (4, 6), (8, 3)
    pos2 = init_positions(k2, spatial2, hidden_size)                # (24, 128)
    out_ns = jax.block_until_ready(
        learnable_position_forward(pos2, spatial2, dims2))
    assert out_ns.shape == (1, 24, hidden_size)
    w_ref2 = jnp.kron(bicubic_matrix(4, 8), bicubic_matrix(6, 3))
    ref_ns = (w_ref2 @ pos2).reshape(1, 24, hidden_size)
    assert jnp.allclose(out_ns, ref_ns, atol=1e-4, rtol=1e-4)

    # --- Case 4: hidden NOT a multiple of 128 (exercises masked lane stores) --
    spatial3, dims3, hid3 = (4, 4), (6, 5), 96
    pos3 = init_positions(k3, spatial3, hid3)                       # (16, 96)
    out_96 = jax.block_until_ready(
        learnable_position_forward(pos3, spatial3, dims3))
    assert out_96.shape == (1, 30, hid3)
    w_ref3 = jnp.kron(bicubic_matrix(4, 6), bicubic_matrix(4, 5))
    ref_96 = (w_ref3 @ pos3).reshape(1, 30, hid3)
    assert jnp.allclose(out_96, ref_96, atol=1e-4, rtol=1e-4)

    # --- Case 5: bf16 operands, f32 MXU accumulation (perf-review option) ----
    out_bf = jax.block_until_ready(
        learnable_position_forward(pos, spatial, dims,
                                   compute_dtype=jnp.bfloat16))
    assert out_bf.shape == (1, 64, hidden_size)
    assert jnp.allclose(out_bf, ref_up, atol=3e-3, rtol=3e-2)

    print("KERNEL_OK")
</pallas_src>

<mosaic_0001>
module attributes {stable_mosaic.version = 11 : i64} {
  func.func @_fused_bicubic_kernel(%arg0: i32, %arg1: memref<8x4xf32, #tpu.memory_space<vmem>>, %arg2: memref<8x4xf32, #tpu.memory_space<vmem>>, %arg3: memref<4x4x128xf32, #tpu.memory_space<vmem>>, %arg4: memref<8x8x128xf32, #tpu.memory_space<vmem>>, %arg5: memref<8x4x128xf32, #tpu.memory_space<vmem>>) attributes {dimension_semantics = [#tpu.dimension_semantics<parallel>], iteration_bounds = array<i64: 1>, scalar_prefetch = 0 : i64, scratch_operands = 1 : i64, tpu.core_type = #tpu.core_type<tc>, window_params = [{pipeline_mode = #tpu.pipeline_mode<synchronous>, transform_indices = @transform_0, window_bounds = array<i64: 8, 4>}, {pipeline_mode = #tpu.pipeline_mode<synchronous>, transform_indices = @transform_1, window_bounds = array<i64: 8, 4>}, {transform_indices = @transform_2, window_bounds = array<i64: 4, 4, 128>}, {transform_indices = @transform_3, window_bounds = array<i64: 8, 8, 128>}]} {
    %c0 = arith.constant 0 : index
    %c0_0 = arith.constant 0 : index
    %0 = vector.load %arg1[%c0, %c0_0] : memref<8x4xf32, #tpu.memory_space<vmem>>, vector<8x4xf32>
    %c0_1 = arith.constant 0 : index
    %c0_2 = arith.constant 0 : index
    %c0_3 = arith.constant 0 : index
    %1 = vector.load %arg3[%c0_1, %c0_2, %c0_3] : memref<4x4x128xf32, #tpu.memory_space<vmem>>, vector<4x1x128xf32>
    %2 = vector.shape_cast %1 : vector<4x1x128xf32> to vector<4x128xf32>
    %cst = arith.constant dense<0.000000e+00> : vector<8x128xf32>
    %3 = tpu.matmul %0, %2, %cst {dimension_numbers = #tpu.dot_dimension_numbers<[1], [0], [0], [1], [0, 0, 1, 1], [], []>} : vector<8x4xf32>, vector<4x128xf32>, vector<8x128xf32> -> vector<8x128xf32>
    %c0_4 = arith.constant 0 : index
    %c0_5 = arith.constant 0 : index
    %c0_6 = arith.constant 0 : index
    %4 = vector.load %arg5[%c0_4, %c0_5, %c0_6] : memref<8x4x128xf32, #tpu.memory_space<vmem>>, vector<8x1x128xf32>
    %5 = vector.shape_cast %4 : vector<8x1x128xf32> to vector<8x128xf32>
    %6 = vector.shape_cast %3 : vector<8x128xf32> to vector<8x1x128xf32>
    tpu.vector_store %arg5[%c0_4, %c0_5, %c0_6], %6 {strides = array<i32>} : memref<8x4x128xf32, #tpu.memory_space<vmem>>, vector<8x1x128xf32>,
    %c0_7 = arith.constant 0 : index
    %c1 = arith.constant 1 : index
    %c0_8 = arith.constant 0 : index
    %7 = vector.load %arg3[%c0_7, %c1, %c0_8] : memref<4x4x128xf32, #tpu.memory_space<vmem>>, vector<4x1x128xf32>
    %8 = vector.shape_cast %7 : vector<4x1x128xf32> to vector<4x128xf32>
    %cst_9 = arith.constant dense<0.000000e+00> : vector<8x128xf32>
    %9 = tpu.matmul %0, %8, %cst_9 {dimension_numbers = #tpu.dot_dimension_numbers<[1], [0], [0], [1], [0, 0, 1, 1], [], []>} : vector<8x4xf32>, vector<4x128xf32>, vector<8x128xf32> -> vector<8x128xf32>
    %c0_10 = arith.constant 0 : index
    %c1_11 = arith.constant 1 : index
    %c0_12 = arith.constant 0 : index
    %10 = vector.load %arg5[%c0_10, %c1_11, %c0_12] : memref<8x4x128xf32, #tpu.memory_space<vmem>>, vector<8x1x128xf32>
    %11 = vector.shape_cast %10 : vector<8x1x128xf32> to vector<8x128xf32>
    %12 = vector.shape_cast %9 : vector<8x128xf32> to vector<8x1x128xf32>
    tpu.vector_store %arg5[%c0_10, %c1_11, %c0_12], %12 {strides = array<i32>} : memref<8x4x128xf32, #tpu.memory_space<vmem>>, vector<8x1x128xf32>,
    %c0_13 = arith.constant 0 : index
    %c2 = arith.constant 2 : index
    %c0_14 = arith.constant 0 : index
    %13 = vector.load %arg3[%c0_13, %c2, %c0_14] : memref<4x4x128xf32, #tpu.memory_space<vmem>>, vector<4x1x128xf32>
    %14 = vector.shape_cast %13 : vector<4x1x128xf32> to vector<4x128xf32>
    %cst_15 = arith.constant dense<0.000000e+00> : vector<8x128xf32>
    %15 = tpu.matmul %0, %14, %cst_15 {dimension_numbers = #tpu.dot_dimension_numbers<[1], [0], [0], [1], [0, 0, 1, 1], [], []>} : vector<8x4xf32>, vector<4x128xf32>, vector<8x128xf32> -> vector<8x128xf32>
    %c0_16 = arith.constant 0 : index
    %c2_17 = arith.constant 2 : index
    %c0_18 = arith.constant 0 : index
    %16 = vector.load %arg5[%c0_16, %c2_17, %c0_18] : memref<8x4x128xf32, #tpu.memory_space<vmem>>, vector<8x1x128xf32>
    %17 = vector.shape_cast %16 : vector<8x1x128xf32> to vector<8x128xf32>
    %18 = vector.shape_cast %15 : vector<8x128xf32> to vector<8x1x128xf32>
    tpu.vector_store %arg5[%c0_16, %c2_17, %c0_18], %18 {strides = array<i32>} : memref<8x4x128xf32, #tpu.memory_space<vmem>>, vector<8x1x128xf32>,
    %c0_19 = arith.constant 0 : index
    %c3 = arith.constant 3 : index
    %c0_20 = arith.constant 0 : index
    %19 = vector.load %arg3[%c0_19, %c3, %c0_20] : memref<4x4x128xf32, #tpu.memory_space<vmem>>, vector<4x1x128xf32>
    %20 = vector.shape_cast %19 : vector<4x1x128xf32> to vector<4x128xf32>
    %cst_21 = arith.constant dense<0.000000e+00> : vector<8x128xf32>
    %21 = tpu.matmul %0, %20, %cst_21 {dimension_numbers = #tpu.dot_dimension_numbers<[1], [0], [0], [1], [0, 0, 1, 1], [], []>} : vector<8x4xf32>, vector<4x128xf32>, vector<8x128xf32> -> vector<8x128xf32>
    %c0_22 = arith.constant 0 : index
    %c3_23 = arith.constant 3 : index
    %c0_24 = arith.constant 0 : index
    %22 = vector.load %arg5[%c0_22, %c3_23, %c0_24] : memref<8x4x128xf32, #tpu.memory_space<vmem>>, vector<8x1x128xf32>
    %23 = vector.shape_cast %22 : vector<8x1x128xf32> to vector<8x128xf32>
    %24 = vector.shape_cast %21 : vector<8x128xf32> to vector<8x1x128xf32>
    tpu.vector_store %arg5[%c0_22, %c3_23, %c0_24], %24 {strides = array<i32>} : memref<8x4x128xf32, #tpu.memory_space<vmem>>, vector<8x1x128xf32>,
    %c0_25 = arith.constant 0 : index
    %c0_26 = arith.constant 0 : index
    %25 = vector.load %arg2[%c0_25, %c0_26] : memref<8x4xf32, #tpu.memory_space<vmem>>, vector<8x4xf32>
    %26 = vector.shape_cast %25 : vector<8x4xf32> to vector<1x8x4xf32>
    %27 = vector.shape_cast %26 : vector<1x8x4xf32> to vector<1x8x4xf32>
    %28 = vector.broadcast %27 : vector<1x8x4xf32> to vector<8x8x4xf32>
    %c0_27 = arith.constant 0 : index
    %c0_28 = arith.constant 0 : index
    %c0_29 = arith.constant 0 : index
    %29 = vector.load %arg5[%c0_27, %c0_28, %c0_29] : memref<8x4x128xf32, #tpu.memory_space<vmem>>, vector<8x4x128xf32>
    %cst_30 = arith.constant dense<0.000000e+00> : vector<8x8x128xf32>
    %30 = tpu.matmul %28, %29, %cst_30 {dimension_numbers = #tpu.dot_dimension_numbers<[2], [1], [1], [2], [0, 0, 0, 1, 1, 2], [0], [0]>} : vector<8x8x4xf32>, vector<8x4x128xf32>, vector<8x8x128xf32> -> vector<8x8x128xf32>
    %c0_31 = arith.constant 0 : index
    %c0_32 = arith.constant 0 : index
    %c0_33 = arith.constant 0 : index
    %31 = vector.load %arg4[%c0_31, %c0_32, %c0_33] : memref<8x8x128xf32, #tpu.memory_space<vmem>>, vector<8x8x128xf32>
    tpu.vector_store %arg4[%c0_31, %c0_32, %c0_33], %30 {strides = array<i32>} : memref<8x8x128xf32, #tpu.memory_space<vmem>>, vector<8x8x128xf32>,
    return
  }
  func.func @transform_0(%arg0: i32) -> (i32, i32) {
    %c0_i32 = arith.constant 0 : i32
    %c0_i32_0 = arith.constant 0 : i32
    %c0_i32_1 = arith.constant 0 : i32
    return %c0_i32, %c0_i32_0 : i32, i32
  }
  func.func @transform_1(%arg0: i32) -> (i32, i32) {
    %c0_i32 = arith.constant 0 : i32
    %c0_i32_0 = arith.constant 0 : i32
    %c0_i32_1 = arith.constant 0 : i32
    return %c0_i32, %c0_i32_0 : i32, i32
  }
  func.func @transform_2(%arg0: i32) -> (i32, i32, i32) {
    %c0_i32 = arith.constant 0 : i32
    %c0_i32_0 = arith.constant 0 : i32
    %c0_i32_1 = arith.constant 0 : i32
    return %c0_i32, %c0_i32_0, %arg0 : i32, i32, i32
  }
  func.func @transform_3(%arg0: i32) -> (i32, i32, i32) {
    %c0_i32 = arith.constant 0 : i32
    %c0_i32_0 = arith.constant 0 : i32
    %c0_i32_1 = arith.constant 0 : i32
    return %c0_i32, %c0_i32_0, %arg0 : i32, i32, i32
  }
}

</mosaic_0001>

<llo_original>
// kernel: tpu_custom_call.1
$region0: #{tpu_custom_call.1}
  #allocation0 [shape = 'u32[]', space=smem, size = 0x4, offset = 0x4, fixed_abs, tag = 'smem constant byte address 0x4 - core index']
  #allocation1 [shape = 'u32[72,128]{1,0:T(1,128)}', space=vmem, size = 0x9000, scoped, tag = 'internal scratch']
  #allocation2 [shape = 'f32[8,4,128]{2,1,0:T(4,128)}', space=vmem, size = 0x4000, scoped, tag = 'scratch operand']
  %s0 = inlined_call_operand.vmem [shape: f32[8,4], index: 0, kind: input, shape index: {}]
  %s1 = inlined_call_operand.vmem [shape: f32[8,4], index: 1, kind: input, shape index: {}]
  %s2 = inlined_call_operand.vmem [shape: f32[4,4,128], index: 2, kind: input, shape index: {}]
  %s3 = inlined_call_operand.hbm [shape: f32[8,8,128], index: 3, kind: output, shape index: {}]
  %s4 = sld [smem:[#allocation0]]
  $region22: #{tpu_custom_call.1} parent=0
    _
  %s6 = ssub.s32 1, %s4
  %s7 = scalar_select 0, %s6, %s4
  $region1: #{tpu_custom_call.1} parent=0
    #allocation3 [shape = 'u8[32768]{0}', space=vmem, size = 0x8000, scoped, tag = 'output window, operand 0, single buffered']
    #allocation4 [shape = 's32[1]{0}', space=sflag, size = 0x4, scoped, tag = 'scoped memory for tpu_custom_call.1']
    %8 = vsyncpa [#allocation4], 0
    // Predicated region
    $region2: #{tpu_custom_call.1} parent=1 // pred_check
      _
    $region3: #{tpu_custom_call.1} parent=1 // pred_check_branch
      %10 = sbr.rel (0) target = $region5
    $region4: #{tpu_custom_call.1} parent=1 // pred_region
      _
    $region5: #{tpu_custom_call.1} parent=1 // pred_fallthru
      _
    // Predicated region
    $region6: #{tpu_custom_call.1} parent=1 // pred_check
      _
    $region7: #{tpu_custom_call.1} parent=1 // pred_check_branch
      %12 = sbr.rel (0) target = $region9
    $region8: #{tpu_custom_call.1} parent=1 // pred_region
      _
    $region9: #{tpu_custom_call.1} parent=1 // pred_fallthru
      _
    // Predicated region
    $region10: #{tpu_custom_call.1} parent=1 // pred_check
      _
    $region11: #{tpu_custom_call.1} parent=1 // pred_check_branch
      %14 = sbr.rel (0) target = $region13
    $region12: #{tpu_custom_call.1} parent=1 // pred_region
      _
    $region13: #{tpu_custom_call.1} parent=1 // pred_fallthru
      _
    %v15 = vld [vmem:[%s0] sm:$0xff]
    %v16 = vld [vmem:[%s2] sm:$0x1]
    %v17 = vld [vmem:[%s2 + $0x4] sm:$0x1]
    %v18 = vld [vmem:[%s2 + $0x8] sm:$0x1]
    %v19 = vld [vmem:[%s2 + $0xc] sm:$0x1]
    %v24 = vrot.slane %v17, 7
    %vm25 = vcmask 1041409
    %v26 = vsel %vm25, %v24, %v16
    %v27 = vrot.slane %v18, 6
    %vm28 = vcmask 1042434
    %v29 = vsel %vm28, %v27, %v26
    %v30 = vrot.slane %v19, 5
    %vm31 = vcmask 1043459
    %v32 = vsel %vm31, %v30, %v29
    %vm33 = vcmask 31744
    %v35 = vsel %vm33, %v15, 0
    %vm37 = vcmask 1043456
    %v38 = vsel %vm37, %v32, 0
    %40 = vmatpush.msra.mxu0 0.0
    %41 = vmatpush.msra.mxu0 0.0
    %42 = vmatpush.msra.mxu0 0.0
    %43 = vmatpush.msra.mxu0 0.0
    %44 = vmatpush.msra.mxu0 0.0
    %45 = vmatpush.msra.mxu0 0.0
    %46 = vmatpush.msra.mxu0 0.0
    %47 = vmatpush.msra.mxu0 0.0
    %48 = vmatpush.msra.mxu0 0.0
    %49 = vmatpush.msra.mxu0 0.0
    %50 = vmatpush.msra.mxu0 0.0
    %51 = vmatpush.msra.mxu0 0.0
    %52 = vmatpush.msra.mxu0 0.0
    %53 = vmatpush.msra.mxu0 0.0
    %54 = vmatpush.msra.mxu0 0.0
    %55 = vmatpush.msra.mxu0 %v38
    %56 = vmatmul.f32.gmra.mxu0 %v35
    %v57 = vpop.f32.mrf.mxu0
    %v58 = vadd.f32 0.0, %v57
    %59 = vdwg.mxu0
    %v61 = vrot.slane %v58, 1
    %v62 = vrot.slane %v58, 2
    %v63 = vrot.slane %v58, 3
    %v64 = vrot.slane %v58, 4
    %v65 = vrot.slane %v58, 5
    %v66 = vrot.slane %v58, 6
    %v67 = vrot.slane %v58, 7
    %75 = vst [vmem:[#allocation2] sm:$0x1] %v58
    %76 = vst [vmem:[#allocation2 + $0x4] sm:$0x1] %v61
    %77 = vst [vmem:[#allocation2 + $0x8] sm:$0x1] %v62
    %78 = vst [vmem:[#allocation2 + $0xc] sm:$0x1] %v63
    %79 = vst [vmem:[#allocation2 + $0x10] sm:$0x1] %v64
    %80 = vst [vmem:[#allocation2 + $0x14] sm:$0x1] %v65
    %81 = vst [vmem:[#allocation2 + $0x18] sm:$0x1] %v66
    %82 = vst [vmem:[#allocation2 + $0x1c] sm:$0x1] %v67
    %v83 = vld [vmem:[%s2 + $0x1] sm:$0x1]
    %v84 = vld [vmem:[%s2 + $0x5] sm:$0x1]
    %v85 = vld [vmem:[%s2 + $0x9] sm:$0x1]
    %v86 = vld [vmem:[%s2 + $0xd] sm:$0x1]
    %v91 = vrot.slane %v84, 7
    %v92 = vsel %vm25, %v91, %v83
    %v93 = vrot.slane %v85, 6
    %v94 = vsel %vm28, %v93, %v92
    %v95 = vrot.slane %v86, 5
    %v96 = vsel %vm31, %v95, %v94
    %v97 = vsel %vm37, %v96, 0
    %99 = vmatpush.msra.mxu0 0.0
    %100 = vmatpush.msra.mxu0 0.0
    %101 = vmatpush.msra.mxu0 0.0
    %102 = vmatpush.msra.mxu0 0.0
    %103 = vmatpush.msra.mxu0 0.0
    %104 = vmatpush.msra.mxu0 0.0
    %105 = vmatpush.msra.mxu0 0.0
    %106 = vmatpush.msra.mxu0 0.0
    %107 = vmatpush.msra.mxu0 0.0
    %108 = vmatpush.msra.mxu0 0.0
    %109 = vmatpush.msra.mxu0 0.0
    %110 = vmatpush.msra.mxu0 0.0
    %111 = vmatpush.msra.mxu0 0.0
    %112 = vmatpush.msra.mxu0 0.0
    %113 = vmatpush.msra.mxu0 0.0
    %114 = vmatpush.msra.mxu0 %v97
    %115 = vmatmul.f32.gmra.mxu0 %v35
    %v116 = vpop.f32.mrf.mxu0
    %v117 = vadd.f32 0.0, %v116
    %118 = vdwg.mxu0
    %v120 = vrot.slane %v117, 1
    %v121 = vrot.slane %v117, 2
    %v122 = vrot.slane %v117, 3
    %v123 = vrot.slane %v117, 4
    %v124 = vrot.slane %v117, 5
    %v125 = vrot.slane %v117, 6
    %v126 = vrot.slane %v117, 7
    %134 = vst [vmem:[#allocation2 + $0x1] sm:$0x1] %v117
    %135 = vst [vmem:[#allocation2 + $0x5] sm:$0x1] %v120
    %136 = vst [vmem:[#allocation2 + $0x9] sm:$0x1] %v121
    %137 = vst [vmem:[#allocation2 + $0xd] sm:$0x1] %v122
    %138 = vst [vmem:[#allocation2 + $0x11] sm:$0x1] %v123
    %139 = vst [vmem:[#allocation2 + $0x15] sm:$0x1] %v124
    %140 = vst [vmem:[#allocation2 + $0x19] sm:$0x1] %v125
    %141 = vst [vmem:[#allocation2 + $0x1d] sm:$0x1] %v126
    %v142 = vld [vmem:[%s2 + $0x2] sm:$0x1]
    %v143 = vld [vmem:[%s2 + $0x6] sm:$0x1]
    %v144 = vld [vmem:[%s2 + $0xa] sm:$0x1]
    %v145 = vld [vmem:[%s2 + $0xe] sm:$0x1]
    %v150 = vrot.slane %v143, 7
    %v151 = vsel %vm25, %v150, %v142
    %v152 = vrot.slane %v144, 6
    %v153 = vsel %vm28, %v152, %v151
    %v154 = vrot.slane %v145, 5
    %v155 = vsel %vm31, %v154, %v153
    %v156 = vsel %vm37, %v155, 0
    %158 = vmatpush.msra.mxu0 0.0
    %159 = vmatpush.msra.mxu0 0.0
    %160 = vmatpush.msra.mxu0 0.0
    %161 = vmatpush.msra.mxu0 0.0
    %162 = vmatpush.msra.mxu0 0.0
    %163 = vmatpush.msra.mxu0 0.0
    %164 = vmatpush.msra.mxu0 0.0
    %165 = vmatpush.msra.mxu0 0.0
    %166 = vmatpush.msra.mxu0 0.0
    %167 = vmatpush.msra.mxu0 0.0
    %168 = vmatpush.msra.mxu0 0.0
    %169 = vmatpush.msra.mxu0 0.0
    %170 = vmatpush.msra.mxu0 0.0
    %171 = vmatpush.msra.mxu0 0.0
    %172 = vmatpush.msra.mxu0 0.0
    %173 = vmatpush.msra.mxu0 %v156
    %174 = vmatmul.f32.gmra.mxu0 %v35
    %v175 = vpop.f32.mrf.mxu0
    %v176 = vadd.f32 0.0, %v175
    %177 = vdwg.mxu0
    %v179 = vrot.slane %v176, 1
    %v180 = vrot.slane %v176, 2
    %v181 = vrot.slane %v176, 3
    %v182 = vrot.slane %v176, 4
    %v183 = vrot.slane %v176, 5
    %v184 = vrot.slane %v176, 6
    %v185 = vrot.slane %v176, 7
    %193 = vst [vmem:[#allocation2 + $0x2] sm:$0x1] %v176
    %194 = vst [vmem:[#allocation2 + $0x6] sm:$0x1] %v179
    %195 = vst [vmem:[#allocation2 + $0xa] sm:$0x1] %v180
    %196 = vst [vmem:[#allocation2 + $0xe] sm:$0x1] %v181
    %197 = vst [vmem:[#allocation2 + $0x12] sm:$0x1] %v182
    %198 = vst [vmem:[#allocation2 + $0x16] sm:$0x1] %v183
    %199 = vst [vmem:[#allocation2 + $0x1a] sm:$0x1] %v184
    %200 = vst [vmem:[#allocation2 + $0x1e] sm:$0x1] %v185
    %v201 = vld [vmem:[%s2 + $0x3] sm:$0x1]
    %v202 = vld [vmem:[%s2 + $0x7] sm:$0x1]
    %v203 = vld [vmem:[%s2 + $0xb] sm:$0x1]
    %v204 = vld [vmem:[%s2 + $0xf] sm:$0x1]
    %v209 = vrot.slane %v202, 7
    %v210 = vsel %vm25, %v209, %v201
    %v211 = vrot.slane %v203, 6
    %v212 = vsel %vm28, %v211, %v210
    %v213 = vrot.slane %v204, 5
    %v214 = vsel %vm31, %v213, %v212
    %v215 = vsel %vm37, %v214, 0
    %217 = vmatpush.msra.mxu0 0.0
    %218 = vmatpush.msra.mxu0 0.0
    %219 = vmatpush.msra.mxu0 0.0
    %220 = vmatpush.msra.mxu0 0.0
    %221 = vmatpush.msra.mxu0 0.0
    %222 = vmatpush.msra.mxu0 0.0
    %223 = vmatpush.msra.mxu0 0.0
    %224 = vmatpush.msra.mxu0 0.0
    %225 = vmatpush.msra.mxu0 0.0
    %226 = vmatpush.msra.mxu0 0.0
    %227 = vmatpush.msra.mxu0 0.0
    %228 = vmatpush.msra.mxu0 0.0
    %229 = vmatpush.msra.mxu0 0.0
    %230 = vmatpush.msra.mxu0 0.0
    %231 = vmatpush.msra.mxu0 0.0
    %232 = vmatpush.msra.mxu0 %v215
    %233 = vmatmul.f32.gmra.mxu0 %v35
    %v234 = vpop.f32.mrf.mxu0
    %v235 = vadd.f32 0.0, %v234
    %236 = vdwg.mxu0
    %v238 = vrot.slane %v235, 1
    %v239 = vrot.slane %v235, 2
    %v240 = vrot.slane %v235, 3
    %v241 = vrot.slane %v235, 4
    %v242 = vrot.slane %v235, 5
    %v243 = vrot.slane %v235, 6
    %v244 = vrot.slane %v235, 7
    %252 = vst [vmem:[#allocation2 + $0x3] sm:$0x1] %v235
    %253 = vst [vmem:[#allocation2 + $0x7] sm:$0x1] %v238
    %254 = vst [vmem:[#allocation2 + $0xb] sm:$0x1] %v239
    %255 = vst [vmem:[#allocation2 + $0xf] sm:$0x1] %v240
    %256 = vst [vmem:[#allocation2 + $0x13] sm:$0x1] %v241
    %257 = vst [vmem:[#allocation2 + $0x17] sm:$0x1] %v242
    %258 = vst [vmem:[#allocation2 + $0x1b] sm:$0x1] %v243
    %259 = vst [vmem:[#allocation2 + $0x1f] sm:$0x1] %v244
    %v260 = vld [vmem:[%s1] sm:$0xff]
    %v261 = vld [vmem:[#allocation2] sm:$0xf]
    %v262 = vld [vmem:[#allocation2 + $0x4] sm:$0xf]
    %v263 = vld [vmem:[#allocation2 + $0x8] sm:$0xf]
    %v264 = vld [vmem:[#allocation2 + $0xc] sm:$0xf]
    %v265 = vld [vmem:[#allocation2 + $0x10] sm:$0xf]
    %v266 = vld [vmem:[#allocation2 + $0x14] sm:$0xf]
    %v267 = vld [vmem:[#allocation2 + $0x18] sm:$0xf]
    %v268 = vld [vmem:[#allocation2 + $0x1c] sm:$0xf]
    %v270 = vsel %vm33, %v260, 0
    %v273 = vsel %vm37, %v261, 0
    %275 = vmatpush.msra.mxu0 0.0
    %276 = vmatpush.msra.mxu0 0.0
    %277 = vmatpush.msra.mxu0 0.0
    %278 = vmatpush.msra.mxu0 0.0
    %279 = vmatpush.msra.mxu0 0.0
    %280 = vmatpush.msra.mxu0 0.0
    %281 = vmatpush.msra.mxu0 0.0
    %282 = vmatpush.msra.mxu0 0.0
    %283 = vmatpush.msra.mxu0 0.0
    %284 = vmatpush.msra.mxu0 0.0
    %285 = vmatpush.msra.mxu0 0.0
    %286 = vmatpush.msra.mxu0 0.0
    %287 = vmatpush.msra.mxu0 0.0
    %288 = vmatpush.msra.mxu0 0.0
    %289 = vmatpush.msra.mxu0 0.0
    %290 = vmatpush.msra.mxu0 %v273
    %291 = vmatmul.f32.gmra.mxu0 %v270
    %v292 = vpop.f32.mrf.mxu0
    %v293 = vadd.f32 0.0, %v292
    %294 = vdwg.mxu0
    %v296 = vsel %vm37, %v262, 0
    %298 = vmatpush.msra.mxu0 0.0
    %299 = vmatpush.msra.mxu0 0.0
    %300 = vmatpush.msra.mxu0 0.0
    %301 = vmatpush.msra.mxu0 0.0
    %302 = vmatpush.msra.mxu0 0.0
    %303 = vmatpush.msra.mxu0 0.0
    %304 = vmatpush.msra.mxu0 0.0
    %305 = vmatpush.msra.mxu0 0.0
    %306 = vmatpush.msra.mxu0 0.0
    %307 = vmatpush.msra.mxu0 0.0
    %308 = vmatpush.msra.mxu0 0.0
    %309 = vmatpush.msra.mxu0 0.0
    %310 = vmatpush.msra.mxu0 0.0
    %311 = vmatpush.msra.mxu0 0.0
    %312 = vmatpush.msra.mxu0 0.0
    %313 = vmatpush.msra.mxu0 %v296
    %314 = vmatmul.f32.gmra.mxu0 %v270
    %v315 = vpop.f32.mrf.mxu0
    %v316 = vadd.f32 0.0, %v315
    %317 = vdwg.mxu0
    %v319 = vsel %vm37, %v263, 0
    %321 = vmatpush.msra.mxu0 0.0
    %322 = vmatpush.msra.mxu0 0.0
    %323 = vmatpush.msra.mxu0 0.0
    %324 = vmatpush.msra.mxu0 0.0
    %325 = vmatpush.msra.mxu0 0.0
    %326 = vmatpush.msra.mxu0 0.0
    %327 = vmatpush.msra.mxu0 0.0
    %328 = vmatpush.msra.mxu0 0.0
    %329 = vmatpush.msra.mxu0 0.0
    %330 = vmatpush.msra.mxu0 0.0
    %331 = vmatpush.msra.mxu0 0.0
    %332 = vmatpush.msra.mxu0 0.0
    %333 = vmatpush.msra.mxu0 0.0
    %334 = vmatpush.msra.mxu0 0.0
    %335 = vmatpush.msra.mxu0 0.0
    %336 = vmatpush.msra.mxu0 %v319
    %337 = vmatmul.f32.gmra.mxu0 %v270
    %v338 = vpop.f32.mrf.mxu0
    %v339 = vadd.f32 0.0, %v338
    %340 = vdwg.mxu0
    %v342 = vsel %vm37, %v264, 0
    %344 = vmatpush.msra.mxu0 0.0
    %345 = vmatpush.msra.mxu0 0.0
    %346 = vmatpush.msra.mxu0 0.0
    %347 = vmatpush.msra.mxu0 0.0
    %348 = vmatpush.msra.mxu0 0.0
    %349 = vmatpush.msra.mxu0 0.0
    %350 = vmatpush.msra.mxu0 0.0
    %351 = vmatpush.msra.mxu0 0.0
    %352 = vmatpush.msra.mxu0 0.0
    %353 = vmatpush.msra.mxu0 0.0
    %354 = vmatpush.msra.mxu0 0.0
    %355 = vmatpush.msra.mxu0 0.0
    %356 = vmatpush.msra.mxu0 0.0
    %357 = vmatpush.msra.mxu0 0.0
    %358 = vmatpush.msra.mxu0 0.0
    %359 = vmatpush.msra.mxu0 %v342
    %360 = vmatmul.f32.gmra.mxu0 %v270
    %v361 = vpop.f32.mrf.mxu0
    %v362 = vadd.f32 0.0, %v361
    %363 = vdwg.mxu0
    %v365 = vsel %vm37, %v265, 0
    %367 = vmatpush.msra.mxu0 0.0
    %368 = vmatpush.msra.mxu0 0.0
    %369 = vmatpush.msra.mxu0 0.0
    %370 = vmatpush.msra.mxu0 0.0
    %371 = vmatpush.msra.mxu0 0.0
    %372 = vmatpush.msra.mxu0 0.0
    %373 = vmatpush.msra.mxu0 0.0
    %374 = vmatpush.msra.mxu0 0.0
    %375 = vmatpush.msra.mxu0 0.0
    %376 = vmatpush.msra.mxu0 0.0
    %377 = vmatpush.msra.mxu0 0.0
    %378 = vmatpush.msra.mxu0 0.0
    %379 = vmatpush.msra.mxu0 0.0
    %380 = vmatpush.msra.mxu0 0.0
    %381 = vmatpush.msra.mxu0 0.0
    %382 = vmatpush.msra.mxu0 %v365
    %383 = vmatmul.f32.gmra.mxu0 %v270
    %v384 = vpop.f32.mrf.mxu0
    %v385 = vadd.f32 0.0, %v384
    %386 = vdwg.mxu0
    %v388 = vsel %vm37, %v266, 0
    %390 = vmatpush.msra.mxu0 0.0
    %391 = vmatpush.msra.mxu0 0.0
    %392 = vmatpush.msra.mxu0 0.0
    %393 = vmatpush.msra.mxu0 0.0
    %394 = vmatpush.msra.mxu0 0.0
    %395 = vmatpush.msra.mxu0 0.0
    %396 = vmatpush.msra.mxu0 0.0
    %397 = vmatpush.msra.mxu0 0.0
    %398 = vmatpush.msra.mxu0 0.0
    %399 = vmatpush.msra.mxu0 0.0
    %400 = vmatpush.msra.mxu0 0.0
    %401 = vmatpush.msra.mxu0 0.0
    %402 = vmatpush.msra.mxu0 0.0
    %403 = vmatpush.msra.mxu0 0.0
    %404 = vmatpush.msra.mxu0 0.0
    %405 = vmatpush.msra.mxu0 %v388
    %406 = vmatmul.f32.gmra.mxu0 %v270
    %v407 = vpop.f32.mrf.mxu0
    %v408 = vadd.f32 0.0, %v407
    %409 = vdwg.mxu0
    %v411 = vsel %vm37, %v267, 0
    %413 = vmatpush.msra.mxu0 0.0
    %414 = vmatpush.msra.mxu0 0.0
    %415 = vmatpush.msra.mxu0 0.0
    %416 = vmatpush.msra.mxu0 0.0
    %417 = vmatpush.msra.mxu0 0.0
    %418 = vmatpush.msra.mxu0 0.0
    %419 = vmatpush.msra.mxu0 0.0
    %420 = vmatpush.msra.mxu0 0.0
    %421 = vmatpush.msra.mxu0 0.0
    %422 = vmatpush.msra.mxu0 0.0
    %423 = vmatpush.msra.mxu0 0.0
    %424 = vmatpush.msra.mxu0 0.0
    %425 = vmatpush.msra.mxu0 0.0
    %426 = vmatpush.msra.mxu0 0.0
    %427 = vmatpush.msra.mxu0 0.0
    %428 = vmatpush.msra.mxu0 %v411
    %429 = vmatmul.f32.gmra.mxu0 %v270
    %v430 = vpop.f32.mrf.mxu0
    %v431 = vadd.f32 0.0, %v430
    %432 = vdwg.mxu0
    %v434 = vsel %vm37, %v268, 0
    %436 = vmatpush.msra.mxu0 0.0
    %437 = vmatpush.msra.mxu0 0.0
    %438 = vmatpush.msra.mxu0 0.0
    %439 = vmatpush.msra.mxu0 0.0
    %440 = vmatpush.msra.mxu0 0.0
    %441 = vmatpush.msra.mxu0 0.0
    %442 = vmatpush.msra.mxu0 0.0
    %443 = vmatpush.msra.mxu0 0.0
    %444 = vmatpush.msra.mxu0 0.0
    %445 = vmatpush.msra.mxu0 0.0
    %446 = vmatpush.msra.mxu0 0.0
    %447 = vmatpush.msra.mxu0 0.0
    %448 = vmatpush.msra.mxu0 0.0
    %449 = vmatpush.msra.mxu0 0.0
    %450 = vmatpush.msra.mxu0 0.0
    %451 = vmatpush.msra.mxu0 %v434
    %452 = vmatmul.f32.gmra.mxu0 %v270
    %v453 = vpop.f32.mrf.mxu0
    %v454 = vadd.f32 0.0, %v453
    %455 = vdwg.mxu0
    %456 = vst [vmem:[#allocation3] sm:$0xff] %v293
    %457 = vst [vmem:[#allocation3 + $0x8] sm:$0xff] %v316
    %458 = vst [vmem:[#allocation3 + $0x10] sm:$0xff] %v339
    %459 = vst [vmem:[#allocation3 + $0x18] sm:$0xff] %v362
    %460 = vst [vmem:[#allocation3 + $0x20] sm:$0xff] %v385
    %461 = vst [vmem:[#allocation3 + $0x28] sm:$0xff] %v408
    %462 = vst [vmem:[#allocation3 + $0x30] sm:$0xff] %v431
    %463 = vst [vmem:[#allocation3 + $0x38] sm:$0xff] %v454
    // Predicated region
    $region14: #{tpu_custom_call.1} parent=1 // pred_check
      _
    $region15: #{tpu_custom_call.1} parent=1 // pred_check_branch
      %465 = sbr.rel (0) target = $region17
    $region16: #{tpu_custom_call.1} parent=1 // pred_region
      %467 = vsyncadd [#allocation4], 0
      %s468 = sshll.u32 [#allocation3], 4
      %s469 = int_to_ptr.vmem [resolvable:$true] %s468
      %s470 = sshll.u32 %s3, 4
      %s471 = int_to_ptr.hbm [resolvable:$true] %s470
      %476 = dma.vmem_to_hbm [thread:$0]  %s469, 1024, %s471, [#allocation4], 128, 128, 8
    $region17: #{tpu_custom_call.1} parent=1 // pred_fallthru
      _
    // Predicated region
    $region18: #{tpu_custom_call.1} parent=1 // pred_check
      _
    $region19: #{tpu_custom_call.1} parent=1 // pred_check_branch
      %478 = sbr.rel (0) target = $region21
    $region20: #{tpu_custom_call.1} parent=1 // pred_region
      %480 = dma.done [#allocation4], 1024
    $region21: #{tpu_custom_call.1} parent=1 // pred_fallthru
      _
    %481 = vsyncpa [#allocation4], 1

</llo_original>
